<compile_context>
chip_gen: v6e
topology: v6e:2x2x1
jax: 0.10.0
libtpu: 0.0.40
codegen_flags: <defaults>
</compile_context>

<pallas_src>
import functools
import math

import jax
import jax.numpy as jnp
from jax.experimental import pallas as pl
from jax.experimental.pallas import tpu as pltpu


# ---------------------------------------------------------------------------
# Kernel 1: softmax(+phi column) + windowed soft-argmax + fused depth-bin epilogue.
# rows = flattened (bs*h*w), lanes = num_bins (d); float32.
# ---------------------------------------------------------------------------
def _softmax_regress_kernel(p_ref, attn_ref, soft_ref, stats_ref):
    a = attn_ref[...].astype(jnp.float32)                    # [tr, d]
    tr, d = a.shape
    phi = p_ref[0]
    log_min, log_range, inv_bins = p_ref[1], p_ref[2], p_ref[3]

    # softmax over cat([a, phi], -1), keeping only the d real bins
    m = jnp.maximum(jnp.max(a, axis=-1, keepdims=True), phi)
    ea = jnp.exp(a - m)
    denom = jnp.sum(ea, axis=-1, keepdims=True) + jnp.exp(phi - m)
    soft = ea / denom                                        # == softmax(cat[a,phi])[..., :-1]
    soft_ref[...] = soft

    # first-occurrence argmax (matches torch.argmax)
    idx = jax.lax.broadcasted_iota(jnp.int32, (tr, d), 1)
    mx = jnp.max(soft, axis=-1, keepdims=True)
    hr = jnp.min(jnp.where(soft == mx, idx, d), axis=-1, keepdims=True)   # [tr, 1]

    # 3-tap window around the argmax == gather of [hr-1, hr, hr+1] with zero padding.
    near = jnp.abs(idx - hr) <= 1
    wsel = jnp.where(near, soft, 0.0)
    norm = jnp.sum(wsel, axis=-1, keepdims=True)
    norm = jnp.where(norm < 0.1, 1.0, norm)                  # norm[norm < 0.1] = 1.0
    depth = jnp.sum(wsel * idx.astype(jnp.float32), axis=-1, keepdims=True) / norm

    # fused compute_depth_bin epilogue (SID / log-spaced bins)
    depth_metric = jnp.exp(log_min + log_range * (depth * inv_bins))

    # lane-dense packed store: col0 = fractional bin index, col1 = metric depth,
    # col2 = argmax (as f32); remaining lanes zero.
    lane = jax.lax.broadcasted_iota(jnp.int32, (tr, 128), 1)
    slab = jnp.where(lane == 0, depth, 0.0)
    slab = jnp.where(lane == 1, depth_metric, slab)
    slab = jnp.where(lane == 2, hr.astype(jnp.float32), slab)
    stats_ref[...] = slab


def _pick_tile_rows(R):
    """Largest divisor of R that is a multiple of 8, <=1024, and gives >=2 grid steps."""
    cap = min(1024, R // 2)
    for tr in range(cap - cap % 8, 7, -8):
        if R % tr == 0:
            return tr
    return R


def softmax_regress(attn_flat, phi, min_depth, max_depth, num_bins):
    R, d = attn_flat.shape
    assert R % 8 == 0, "flattened (bs*h*w) must be a multiple of 8"
    TR = _pick_tile_rows(R)
    # TODO(synk): when num_bins < 128 the d-lane tiles use <128 lanes; a 4-rows-per-
    # vreg-row repack (segmented reductions) would recover VPU/EUP utilization.
    p = jnp.concatenate([
        phi.reshape(1).astype(jnp.float32),
        jnp.array([math.log(min_depth),
                   math.log(max_depth) - math.log(min_depth),
                   1.0 / (num_bins - 1)], jnp.float32)])
    return pl.pallas_call(
        _softmax_regress_kernel,
        out_shape=(jax.ShapeDtypeStruct((R, d), jnp.float32),
                   jax.ShapeDtypeStruct((R, 128), jnp.float32)),
        grid=(R // TR,),
        in_specs=[pl.BlockSpec(memory_space=pltpu.MemorySpace.SMEM),   # packed scalars (4,)
                  pl.BlockSpec((TR, d), lambda i: (i, 0))],
        out_specs=(pl.BlockSpec((TR, d), lambda i: (i, 0)),
                   pl.BlockSpec((TR, 128), lambda i: (i, 0))),
        compiler_params=pltpu.CompilerParams(dimension_semantics=("parallel",)),
    )(p, attn_flat)


# ---------------------------------------------------------------------------
# Kernel 2: fully fused ContextAdjustmentLayer + fused depth-bin epilogue,
# row-tiled with an RF-row recompute halo.  Every 3x3 conv is one MXU dot of the
# im2col value (tileHW, 9*cin) against host-reshaped (9*cin, cout) weights; the
# halo scratch is channels-last with plane 0 permanently holding d_norm.
# ---------------------------------------------------------------------------
def _cal_fused_kernel(*refs, TH, RF, W, feat_dim, expansion, num_blocks):
    p_ref, tin_ref, draw_ref, in_w, in_b = refs[:5]
    blk_refs = refs[5:5 + 4 * num_blocks]
    out_w, out_b = refs[5 + 4 * num_blocks], refs[6 + 4 * num_blocks]
    o_depth, o_metric = refs[7 + 4 * num_blocks], refs[8 + 4 * num_blocks]
    xpad = refs[9 + 4 * num_blocks]

    fd = feat_dim
    fe = feat_dim * expansion
    Hh = TH + 2 * RF                      # tile rows incl. recompute halo
    HhW = Hh * W
    cmax = xpad.shape[-1]

    # clear only the 1-px zero border of the halo scratch (interior is fully
    # overwritten before every read)
    xpad[0:1, :, :] = jnp.zeros((1, W + 2, cmax), jnp.float32)
    xpad[Hh + 1:Hh + 2, :, :] = jnp.zeros((1, W + 2, cmax), jnp.float32)
    xpad[:, 0:1, :] = jnp.zeros((Hh + 2, 1, cmax), jnp.float32)
    xpad[:, W + 1:W + 2, :] = jnp.zeros((Hh + 2, 1, cmax), jnp.float32)

    # staged [d_norm, rgb] halo tile -> planes 0..3 (d_norm stays in plane 0 for
    # every ResBlock; rgb planes get overwritten by feat after in_conv)
    xpad[1:Hh + 1, 1:W + 1, 0:4] = tin_ref[...]

    def conv3x3(cw, w_ref, b_ref, relu=False):
        # "same" 3x3 conv as ONE MXU dot: im2col of the 9 shifted windows (K = 9*cw).
        taps = []
        for dy in range(3):
            for dx in range(3):
                taps.append(xpad[dy:dy + Hh, dx:dx + W, 0:cw].reshape(HhW, cw))
        col = jnp.concatenate(taps, axis=-1)                          # (HhW, 9*cw)
        acc = jnp.dot(col, w_ref[...],
                      preferred_element_type=jnp.float32) + b_ref[...]
        # TODO(synk): bf16 im2col/weights would double MXU throughput on v6e/v7x.
        if relu:
            acc = jnp.maximum(acc, 0.0)
        return acc

    # in_conv: channels = [d_norm, rgb]
    feat = conv3x3(4, in_w, in_b)                                     # (HhW, fd)

    for i in range(num_blocks):
        w1, b1, w2, b2 = blk_refs[4 * i:4 * i + 4]
        # ResBlock conv1 input planes = [d_norm(0), feat(1..fd)]
        xpad[1:Hh + 1, 1:W + 1, 1:1 + fd] = feat.reshape(Hh, W, fd)
        h1 = conv3x3(1 + fd, w1, b1, relu=True)
        xpad[1:Hh + 1, 1:W + 1, 1:1 + fe] = h1.reshape(Hh, W, fe)
        h2 = conv3x3(1 + fe, w2, b2)          # d_norm rows of w2 are zero on the host
        feat = feat + h2                                              # res_scale = 1.0

    # out_conv: fd -> 1 (d_norm rows zeroed), residual on the raw depth
    xpad[1:Hh + 1, 1:W + 1, 1:1 + fd] = feat.reshape(Hh, W, fd)
    res = conv3x3(1 + fd, out_w, out_b)                               # (HhW, 1)
    res_hw = res.reshape(Hh, W)

    # keep only the TH exact interior rows (halo rows are recompute)
    d_final = draw_ref[...] + res_hw[RF:RF + TH, :]                   # (TH, W) lane-dense
    o_depth[...] = d_final

    # fused compute_depth_bin epilogue (SID / log-spaced bins)
    log_min, log_range, inv_bins = p_ref[0], p_ref[1], p_ref[2]
    o_metric[...] = jnp.exp(log_min + log_range * (d_final * inv_bins))


def _pick_row_tile(H):
    for th in (64, 32, 16, 8):
        if th < H and H % th == 0:
            return th
    return H


def cal_fused(cal, depth_hw, img_hwc, min_depth, max_depth, num_bins):
    # TODO(synk): vidar's compute_depth_bin source not provided; assuming SID (log) bins.
    H, W = depth_hw.shape
    fd, ex = cal['feat_dim'], cal['expansion']
    nblk = len(cal['blocks'])
    RF = 2 + 2 * nblk                       # number of 3x3 convs == halo rows per side
    TH = _pick_row_tile(H)
    n_t = H // TH
    Hh = TH + 2 * RF
    cmax = max(4, 1 + fd * ex)

    # global mean / unbiased std of the raw depth in plain JAX (unblocks tiling)
    mean = jnp.mean(depth_hw)
    std = jnp.std(depth_hw, ddof=1)
    d_norm = (depth_hw - mean) / (std + 1e-6)

    # channels-last [d_norm, rgb], RF zero rows of padding, then overlapping row
    # windows staged into a non-overlapping array so BlockSpec can auto-pipeline.
    dn_img = jnp.concatenate([d_norm[..., None], img_hwc], axis=-1)   # (H, W, 4)
    dn_img = jnp.pad(dn_img, ((RF, RF), (0, 0), (0, 0)))
    tiles = jnp.stack([dn_img[i * TH:i * TH + Hh] for i in range(n_t)], axis=0)

    p = jnp.array([math.log(min_depth),
                   math.log(max_depth) - math.log(min_depth),
                   1.0 / (num_bins - 1)], jnp.float32)

    args = [p, tiles, depth_hw.astype(jnp.float32), cal['in_w'], cal['in_b']]
    for blk in cal['blocks']:
        args += [blk['w1'], blk['b1'], blk['w2'], blk['b2']]
    args += [cal['out_w'], cal['out_b']]

    # per-tile VMEM working-set estimate -> explicit limit with headroom
    w_bytes = sum(int(a.size) * 4 for a in args[3:])
    est = 4 * ((Hh + 2) * (W + 2) * cmax        # halo scratch
               + 2 * Hh * W * 4                 # staged tile (double buffered)
               + Hh * W * 9 * cmax              # widest im2col value
               + 4 * TH * W) + w_bytes
    vmem_limit = int(min(max(4 * est, 16 * 2 ** 20), 96 * 2 ** 20))

    kern = functools.partial(_cal_fused_kernel, TH=TH, RF=RF, W=W,
                             feat_dim=fd, expansion=ex, num_blocks=nblk)
    vspec = pl.BlockSpec(memory_space=pltpu.MemorySpace.VMEM)
    in_specs = ([pl.BlockSpec(memory_space=pltpu.MemorySpace.SMEM),        # packed scalars
                 pl.BlockSpec((None, Hh, W, 4), lambda i: (i, 0, 0, 0)),    # halo'd tile
                 pl.BlockSpec((TH, W), lambda i: (i, 0))]                   # raw depth tile
                + [vspec] * (len(args) - 3))                                # weights / biases
    out_spec = pl.BlockSpec((TH, W), lambda i: (i, 0))
    return pl.pallas_call(
        kern,
        out_shape=(jax.ShapeDtypeStruct((H, W), jnp.float32),
                   jax.ShapeDtypeStruct((H, W), jnp.float32)),
        grid=(n_t,),
        in_specs=in_specs,
        out_specs=(out_spec, out_spec),
        scratch_shapes=[pltpu.VMEM((Hh + 2, W + 2, cmax), jnp.float32)],
        compiler_params=pltpu.CompilerParams(
            dimension_semantics=("parallel",),
            vmem_limit_bytes=vmem_limit),
    )(*args)


# ---------------------------------------------------------------------------
# Glue: nearest upsample, layout transposes, forward.
# ---------------------------------------------------------------------------
def _squeeze1(x):
    return jnp.squeeze(x, axis=1) if x.shape[1] == 1 else x


def nearest_upsample(x, H, W):
    # PyTorch F.interpolate(mode='nearest'): src = floor(dst * in/out)
    _, _, h, w = x.shape
    ih = (jnp.arange(H) * h) // H
    iw = (jnp.arange(W) * w) // W
    return x[:, :, ih, :][:, :, :, iw]


def upsample_and_cal(params, target, depth_pred_low, min_depth, max_depth, num_bins, scale=1.0):
    B, C, H, W = target.shape
    depth_pred_attn = depth_pred_low * scale                      # (bs, h, w)
    dp = nearest_upsample(depth_pred_attn[None], H, W)            # (1, bs, H, W)
    assert B == 1 and dp.shape[1] == 1, "reference cat along dim=1 requires batch size 1"
    img_hwc = jnp.transpose(target[0], (1, 2, 0))                 # NCHW -> HWC: (H, W, 3)
    depth_hw = dp[0, 0]                                           # (H, W) lane-dense
    d_final, d_metric = cal_fused(params['cal'], depth_hw, img_hwc,
                                  min_depth, max_depth, num_bins)
    return d_final[None], d_metric[None], depth_pred_attn         # (1, H, W) each


def forward2(params, attn_weight, target, sampled_cols, min_depth, max_depth, num_bins, stride=1):
    bs, h, w, d = attn_weight.shape
    output = {}
    if stride > 1:  # forward() only ever uses stride == 1; kept for completeness
        d = d // stride
        attn_weight = attn_weight[..., :d * stride].reshape(bs, h, w, d, stride).mean(-1)
    nb = num_bins // stride

    attn_flat = attn_weight.reshape(bs * h * w, d).astype(jnp.float32)
    soft, stats = softmax_regress(attn_flat, params['phi'], min_depth, max_depth, nb)
    output['attn_weight_softmax'] = soft.reshape(bs, h, w, d)
    output['high_response'] = stats[:, 2].astype(jnp.int32).reshape(bs, h, w)  # torch: int64
    depth_low = stats[:, 0].reshape(bs, h, w)
    depth_low_metric = stats[:, 1].reshape(bs, h, w)   # fused conversion valid since scale == 1.0

    if sampled_cols is not None:
        # depth_pred2 path is bit-identical to depth_pred1 -> run the CAL once and reuse.
        depth_full, depth_full_metric, depth_attn = upsample_and_cal(
            params, target, depth_low, min_depth, max_depth, nb)
        output['depth_pred1'] = depth_full
        output['depth_pred1_low'] = _squeeze1(depth_attn)
        output['depth_pred2'] = depth_full
        output['depth_pred2_low'] = _squeeze1(depth_attn)
        output['depth1'] = depth_full_metric
        output['depth1_low'] = _squeeze1(depth_low_metric)
        output['depth2'] = depth_full_metric
        output['depth2_low'] = _squeeze1(depth_low_metric)
    else:
        output['depth_pred_low'] = depth_low
        output['depth_pred'] = depth_low
        # NOTE: the PyTorch reference reads output['depth_pred1'] here and would
        # raise KeyError; fall back to the low-res prediction instead of crashing.
        output['depth1'] = depth_low_metric
        output['depth1_low'] = depth_low_metric
        output['depth2'] = depth_low_metric
        output['depth2_low'] = depth_low_metric
    return output


def regression_head_forward(params, attn_weight, target, context, sampled_rows, sampled_cols,
                            min_depth, max_depth, num_bins):
    stride = [1]
    outputs = [forward2(params, attn_weight, target, sampled_cols,
                        min_depth, max_depth, num_bins, s) for s in stride]
    return {k: [o[k] for o in outputs] for k in outputs[0].keys()}


# ---------------------------------------------------------------------------
# Deterministic synthetic parameters (phi + ContextAdjustmentLayer convs).
# weight_norm is a forward-time reparameterisation; effective weights are used directly.
# Kernel weight layout: (9 * (1 + c_feat), c_out), rows tap-major (k = ky*3 + kx) then
# input channel, with channel 0 = normalized-depth plane (rows zeroed when that conv
# does not consume d_norm).  A real torch checkpoint maps via
#   w_kernel[k*(1+cf) + c, o] = w_torch[o, perm(c), ky, kx].
# ---------------------------------------------------------------------------
def init_params(key, feat_dim=16, expansion=2, num_blocks=2):
    def conv_wb(k, c_feat, cout, use_dn, scale=0.1):
        kw, kb = jax.random.split(k)
        cw = 1 + c_feat
        w = scale * jax.random.normal(kw, (9, cw, cout), jnp.float32)
        if not use_dn:
            w = w.at[:, 0, :].set(0.0)
        b = scale * jax.random.normal(kb, (1, cout), jnp.float32)
        return w.reshape(9 * cw, cout), b

    keys = jax.random.split(key, 2 + 2 * num_blocks)
    cal = {'feat_dim': feat_dim, 'expansion': expansion, 'blocks': []}
    cal['in_w'], cal['in_b'] = conv_wb(keys[0], 3, feat_dim, use_dn=True)
    for i in range(num_blocks):
        w1, b1 = conv_wb(keys[1 + 2 * i], feat_dim, feat_dim * expansion, use_dn=True)
        w2, b2 = conv_wb(keys[2 + 2 * i], feat_dim * expansion, feat_dim, use_dn=False)
        cal['blocks'].append({'w1': w1, 'b1': b1, 'w2': w2, 'b2': b2})
    cal['out_w'], cal['out_b'] = conv_wb(keys[-1], feat_dim, 1, use_dn=False)
    return {'phi': jnp.zeros((1,), jnp.float32), 'cal': cal}


if __name__ == "__main__":
    key = jax.random.PRNGKey(0)
    k_attn, k_img, k_par = jax.random.split(key, 3)

    bs, h, w, d = 1, 8, 8, 32          # attention: [bs, h, w, num_bins]
    C, H, W = 3, 16, 16                # target image (NCHW, like PyTorch)
    num_bins = d
    min_depth, max_depth = 0.5, 10.0

    attn_weight = jax.random.normal(k_attn, (bs, h, w, d), jnp.float32)
    target = jax.random.normal(k_img, (bs, C, H, W), jnp.float32)
    context = None
    sampled_rows = jnp.arange(h)
    sampled_cols = jnp.arange(w)

    params = init_params(k_par, feat_dim=16, expansion=2, num_blocks=2)

    out = regression_head_forward(params, attn_weight, target, context,
                                  sampled_rows, sampled_cols,
                                  min_depth, max_depth, num_bins)
    jax.block_until_ready(out)
    print("KERNEL_OK")
</pallas_src>

<mosaic_0001>
module attributes {stable_mosaic.version = 11 : i64} {
  func.func @_softmax_regress_kernel(%arg0: i32, %arg1: memref<4xf32, #tpu.memory_space<smem>>, %arg2: memref<32x32xf32, #tpu.memory_space<vmem>>, %arg3: memref<32x32xf32, #tpu.memory_space<vmem>>, %arg4: memref<32x128xf32, #tpu.memory_space<vmem>>) attributes {dimension_semantics = [#tpu.dimension_semantics<parallel>], iteration_bounds = array<i64: 2>, scalar_prefetch = 0 : i64, scratch_operands = 0 : i64, tpu.core_type = #tpu.core_type<tc>, window_params = [{transform_indices = @transform_0, window_bounds = array<i64: 4>}, {transform_indices = @transform_1, window_bounds = array<i64: 32, 32>}, {transform_indices = @transform_2, window_bounds = array<i64: 32, 32>}, {transform_indices = @transform_3, window_bounds = array<i64: 32, 128>}]} {
    %c0 = arith.constant 0 : index
    %c0_0 = arith.constant 0 : index
    %0 = vector.load %arg2[%c0, %c0_0] : memref<32x32xf32, #tpu.memory_space<vmem>>, vector<32x32xf32>
    %c0_1 = arith.constant 0 : index
    %1 = memref.load %arg1[%c0_1] : memref<4xf32, #tpu.memory_space<smem>>
    %c1 = arith.constant 1 : index
    %2 = memref.load %arg1[%c1] : memref<4xf32, #tpu.memory_space<smem>>
    %c2 = arith.constant 2 : index
    %3 = memref.load %arg1[%c2] : memref<4xf32, #tpu.memory_space<smem>>
    %c3 = arith.constant 3 : index
    %4 = memref.load %arg1[%c3] : memref<4xf32, #tpu.memory_space<smem>>
    %cst = arith.constant dense<0xFF800000> : vector<32xf32>
    %5 = vector.multi_reduction <maximumf>, %0, %cst [1] : vector<32x32xf32> to vector<32xf32>
    %6 = vector.shape_cast %5 : vector<32xf32> to vector<32x1xf32>
    %7 = vector.broadcast %1 : f32 to vector<32x1xf32>
    %8 = arith.maximumf %6, %7 : vector<32x1xf32>
    %9 = vector.broadcast %8 : vector<32x1xf32> to vector<32x32xf32>
    %10 = arith.subf %0, %9 : vector<32x32xf32>
    %11 = math.exp %10 : vector<32x32xf32>
    %cst_2 = arith.constant dense<0.000000e+00> : vector<32xf32>
    %12 = vector.multi_reduction <add>, %11, %cst_2 [1] : vector<32x32xf32> to vector<32xf32>
    %13 = vector.shape_cast %12 : vector<32xf32> to vector<32x1xf32>
    %14 = vector.broadcast %1 : f32 to vector<32x1xf32>
    %15 = arith.subf %14, %8 : vector<32x1xf32>
    %16 = math.exp %15 : vector<32x1xf32>
    %17 = arith.addf %13, %16 : vector<32x1xf32>
    %18 = vector.broadcast %17 : vector<32x1xf32> to vector<32x32xf32>
    %19 = arith.divf %11, %18 : vector<32x32xf32>
    %c0_3 = arith.constant 0 : index
    %c0_4 = arith.constant 0 : index
    %20 = vector.load %arg3[%c0_3, %c0_4] : memref<32x32xf32, #tpu.memory_space<vmem>>, vector<32x32xf32>
    tpu.vector_store %arg3[%c0_3, %c0_4], %19 {strides = array<i32>} : memref<32x32xf32, #tpu.memory_space<vmem>>, vector<32x32xf32>,
    %21 = tpu.iota {dimensions = array<i32: 1>} : vector<32x32xi32>
    %cst_5 = arith.constant dense<0xFF800000> : vector<32xf32>
    %22 = vector.multi_reduction <maximumf>, %19, %cst_5 [1] : vector<32x32xf32> to vector<32xf32>
    %23 = vector.shape_cast %22 : vector<32xf32> to vector<32x1xf32>
    %24 = vector.broadcast %23 : vector<32x1xf32> to vector<32x32xf32>
    %25 = arith.cmpf oeq, %19, %24 : vector<32x32xf32>
    %c32_i32 = arith.constant 32 : i32
    %26 = vector.broadcast %c32_i32 : i32 to vector<32x32xi32>
    %27 = arith.select %25, %21, %26 : vector<32x32xi1>, vector<32x32xi32>
    %cst_6 = arith.constant dense<2147483647> : vector<32xi32>
    %28 = vector.multi_reduction <minsi>, %27, %cst_6 [1] : vector<32x32xi32> to vector<32xi32>
    %29 = vector.shape_cast %28 : vector<32xi32> to vector<32x1xi32>
    %30 = vector.broadcast %29 : vector<32x1xi32> to vector<32x32xi32>
    %31 = arith.subi %21, %30 : vector<32x32xi32>
    %32 = math.absi %31 : vector<32x32xi32>
    %c1_i32 = arith.constant 1 : i32
    %33 = vector.broadcast %c1_i32 : i32 to vector<32x32xi32>
    %34 = arith.cmpi sle, %32, %33 : vector<32x32xi32>
    %cst_7 = arith.constant 0.000000e+00 : f32
    %35 = vector.broadcast %cst_7 : f32 to vector<32x32xf32>
    %36 = arith.select %34, %19, %35 : vector<32x32xi1>, vector<32x32xf32>
    %cst_8 = arith.constant dense<0.000000e+00> : vector<32xf32>
    %37 = vector.multi_reduction <add>, %36, %cst_8 [1] : vector<32x32xf32> to vector<32xf32>
    %38 = vector.shape_cast %37 : vector<32xf32> to vector<32x1xf32>
    %cst_9 = arith.constant 1.000000e-01 : f32
    %39 = vector.broadcast %cst_9 : f32 to vector<32x1xf32>
    %40 = arith.cmpf olt, %38, %39 : vector<32x1xf32>
    %cst_10 = arith.constant 1.000000e+00 : f32
    %41 = vector.broadcast %cst_10 : f32 to vector<32x1xf32>
    %42 = arith.select %40, %41, %38 : vector<32x1xi1>, vector<32x1xf32>
    %43 = arith.sitofp %21 : vector<32x32xi32> to vector<32x32xf32>
    %44 = arith.mulf %36, %43 : vector<32x32xf32>
    %cst_11 = arith.constant dense<0.000000e+00> : vector<32xf32>
    %45 = vector.multi_reduction <add>, %44, %cst_11 [1] : vector<32x32xf32> to vector<32xf32>
    %46 = vector.shape_cast %45 : vector<32xf32> to vector<32x1xf32>
    %47 = arith.divf %46, %42 : vector<32x1xf32>
    %48 = vector.broadcast %4 : f32 to vector<32x1xf32>
    %49 = arith.mulf %47, %48 : vector<32x1xf32>
    %50 = vector.broadcast %3 : f32 to vector<32x1xf32>
    %51 = arith.mulf %50, %49 : vector<32x1xf32>
    %52 = vector.broadcast %2 : f32 to vector<32x1xf32>
    %53 = arith.addf %52, %51 : vector<32x1xf32>
    %54 = math.exp %53 : vector<32x1xf32>
    %55 = tpu.iota {dimensions = array<i32: 1>} : vector<32x128xi32>
    %c0_i32 = arith.constant 0 : i32
    %56 = vector.broadcast %c0_i32 : i32 to vector<32x128xi32>
    %57 = arith.cmpi eq, %55, %56 : vector<32x128xi32>
    %cst_12 = arith.constant 0.000000e+00 : f32
    %58 = vector.shape_cast %47 : vector<32x1xf32> to vector<32x1xf32>
    %59 = vector.broadcast %58 : vector<32x1xf32> to vector<32x128xf32>
    %60 = vector.broadcast %cst_12 : f32 to vector<32x128xf32>
    %61 = arith.select %57, %59, %60 : vector<32x128xi1>, vector<32x128xf32>
    %c1_i32_13 = arith.constant 1 : i32
    %62 = vector.broadcast %c1_i32_13 : i32 to vector<32x128xi32>
    %63 = arith.cmpi eq, %55, %62 : vector<32x128xi32>
    %64 = vector.shape_cast %54 : vector<32x1xf32> to vector<32x1xf32>
    %65 = vector.broadcast %64 : vector<32x1xf32> to vector<32x128xf32>
    %66 = arith.select %63, %65, %61 : vector<32x128xi1>, vector<32x128xf32>
    %c2_i32 = arith.constant 2 : i32
    %67 = vector.broadcast %c2_i32 : i32 to vector<32x128xi32>
    %68 = arith.cmpi eq, %55, %67 : vector<32x128xi32>
    %69 = arith.sitofp %29 : vector<32x1xi32> to vector<32x1xf32>
    %70 = vector.shape_cast %69 : vector<32x1xf32> to vector<32x1xf32>
    %71 = vector.broadcast %70 : vector<32x1xf32> to vector<32x128xf32>
    %72 = arith.select %68, %71, %66 : vector<32x128xi1>, vector<32x128xf32>
    %c0_14 = arith.constant 0 : index
    %c0_15 = arith.constant 0 : index
    %73 = vector.load %arg4[%c0_14, %c0_15] : memref<32x128xf32, #tpu.memory_space<vmem>>, vector<32x128xf32>
    tpu.vector_store %arg4[%c0_14, %c0_15], %72 {strides = array<i32>} : memref<32x128xf32, #tpu.memory_space<vmem>>, vector<32x128xf32>,
    return
  }
  func.func @transform_0(%arg0: i32) -> i32 {
    %c0_i32 = arith.constant 0 : i32
    %c0_i32_0 = arith.constant 0 : i32
    return %c0_i32 : i32
  }
  func.func @transform_1(%arg0: i32) -> (i32, i32) {
    %c0_i32 = arith.constant 0 : i32
    %c0_i32_0 = arith.constant 0 : i32
    return %arg0, %c0_i32 : i32, i32
  }
  func.func @transform_2(%arg0: i32) -> (i32, i32) {
    %c0_i32 = arith.constant 0 : i32
    %c0_i32_0 = arith.constant 0 : i32
    return %arg0, %c0_i32 : i32, i32
  }
  func.func @transform_3(%arg0: i32) -> (i32, i32) {
    %c0_i32 = arith.constant 0 : i32
    %c0_i32_0 = arith.constant 0 : i32
    return %arg0, %c0_i32 : i32, i32
  }
}

</mosaic_0001>

<llo_original>
// kernel: tpu_custom_call.1
$region0: #{tpu_custom_call.1}
  #allocation0 [shape = 'u32[]', space=smem, size = 0x4, offset = 0x4, fixed_abs, tag = 'smem constant byte address 0x4 - core index']
  #allocation1 [shape = 'u32[144,128]{1,0:T(1,128)}', space=vmem, size = 0x12000, scoped, tag = 'internal scratch']
  %s0 = inlined_call_operand.vmem [shape: f32[4], index: 0, kind: input, shape index: {}]
  %s1 = inlined_call_operand.vmem [shape: f32[64,32], index: 1, kind: input, shape index: {}]
  %s2 = inlined_call_operand.vmem [shape: f32[64,32], index: 2, kind: output, shape index: {0}]
  %s3 = inlined_call_operand.hbm [shape: f32[64,128], index: 3, kind: output, shape index: {1}]
  %4 = xla_tuple %s2, %s3
  %s5 = sld [smem:[#allocation0]]
  $region53: #{tpu_custom_call.1} parent=0
    _
  %s7 = ssub.s32 1, %s5
  %s8 = scalar_select 0, %s7, %s5
  $region1: #{tpu_custom_call.1} parent=0
    #allocation2 [shape = 'u8[512]{0}', space=smem, size = 0x200, scoped, tag = 'input window, operand 0, single buffered']
    #allocation3 [shape = 's32[2]{0}', space=sflag, size = 0x8, scoped, tag = 'scoped memory for tpu_custom_call.1']
    #allocation4 [shape = 's32[2]{0}', space=sflag, size = 0x8, scoped, tag = 'scoped memory for tpu_custom_call.1']
    #allocation5 [shape = 'u8[32768]{0}', space=vmem, size = 0x8000, scoped, tag = 'output window, operand 1']
    %9 = vsyncpa [#allocation4], 0
    %10 = vsyncpa [#allocation3], 0
    %s11 = scalar_lea.sflag [#allocation3], 1
    %12 = vsyncpa %s11, 0
    loop: start=0, step=1, limit=4
    $region2: #{tpu_custom_call.1} parent=1 // loop_pre_header
      _
    $region3: #{tpu_custom_call.1} parent=1 // loop_header
      %s14 = sphi 0, %s18
      %p15 = scmp.ge.s32.totalorder %s14, 4
      %s22 = sphi 0, %s22
      %s24 = sphi 0, %s22
      %s25 = sphi 0, %s24
      %s39 = sphi 0, %s25
      %s45 = sphi 0, %s47
      %s48 = sphi 0, %s45
      %s49 = sphi 0, %s48
      %s65 = sphi 0, %s49
      %s71 = sphi 0, %s73
      %s74 = sphi 0, %s71
      %s75 = sphi 0, %s74
      %s91 = sphi 0, %s75
      %s97 = sphi 0, %s99
      %s100 = sphi 0, %s97
      %s101 = sphi 0, %s100
      %s117 = sphi 0, %s101
    $region4: #{tpu_custom_call.1} parent=1 // loop_header_branch
      %17 = sbr.rel (%p15) target = $region8
    $region5: #{tpu_custom_call.1} parent=1 // loop_body
      %s19 = ssub.s32 %s14, 1
      %s20 = ssub.s32 %s14, 2
      %s21 = sadd.s32 %s14, 1
      %s23 = sadd.s32 %s22, 1
      %p26 = scmp.eq.s32.totalorder %s14, 1
      %p27 = scmp.ne.s32.totalorder %s22, %s24
      %p28 = scmp.eq.s32.totalorder %s14, 0
      %p29 = por %p27, %p28
      %p30 = scmp.ne.s32.totalorder %s22, %s24
      %p31 = scmp.eq.s32.totalorder %s19, 1
      %p32 = por %p30, %p31
      %p33 = scmp.ne.s32.totalorder %s24, %s25
      %p34 = scmp.eq.s32.totalorder %s19, 0
      %p35 = por %p33, %p34
      %p36 = scmp.ne.s32.totalorder %s24, %s25
      %p37 = scmp.eq.s32.totalorder %s20, 1
      %p38 = por %p36, %p37
      %p40 = scmp.ne.s32.totalorder %s25, %s39
      %p41 = scmp.eq.s32.totalorder %s20, 0
      %p42 = por %p40, %p41
      %s43 = ssub.s32 %s14, %s21
      %p44 = scmp.eq.s32.totalorder %s43, 0
      %s46 = sadd.s32 %s45, 1
      %s47 = scalar_select %p44, %s45, %s46
      %p50 = pneg %p44
      %p51 = scmp.eq.s32.totalorder %s14, 1
      %p52 = por %p50, %p51
      %p53 = scmp.ne.s32.totalorder %s45, %s48
      %p54 = scmp.eq.s32.totalorder %s14, 0
      %p55 = por %p53, %p54
      %p56 = scmp.ne.s32.totalorder %s45, %s48
      %p57 = scmp.eq.s32.totalorder %s19, 1
      %p58 = por %p56, %p57
      %p59 = scmp.ne.s32.totalorder %s48, %s49
      %p60 = scmp.eq.s32.totalorder %s19, 0
      %p61 = por %p59, %p60
      %p62 = scmp.ne.s32.totalorder %s48, %s49
      %p63 = scmp.eq.s32.totalorder %s20, 1
      %p64 = por %p62, %p63
      %p66 = scmp.ne.s32.totalorder %s49, %s65
      %p67 = scmp.eq.s32.totalorder %s20, 0
      %p68 = por %p66, %p67
      %s69 = ssub.s32 %s14, %s21
      %p70 = scmp.eq.s32.totalorder %s69, 0
      %s72 = sadd.s32 %s71, 1
      %s73 = scalar_select %p70, %s71, %s72
      %p76 = pneg %p70
      %p77 = scmp.eq.s32.totalorder %s14, 1
      %p78 = por %p76, %p77
      %p79 = scmp.ne.s32.totalorder %s71, %s74
      %p80 = scmp.eq.s32.totalorder %s14, 0
      %p81 = por %p79, %p80
      %p82 = scmp.ne.s32.totalorder %s71, %s74
      %p83 = scmp.eq.s32.totalorder %s19, 1
      %p84 = por %p82, %p83
      %p85 = scmp.ne.s32.totalorder %s74, %s75
      %p86 = scmp.eq.s32.totalorder %s19, 0
      %p87 = por %p85, %p86
      %p88 = scmp.ne.s32.totalorder %s74, %s75
      %p89 = scmp.eq.s32.totalorder %s20, 1
      %p90 = por %p88, %p89
      %p92 = scmp.ne.s32.totalorder %s75, %s91
      %p93 = scmp.eq.s32.totalorder %s20, 0
      %p94 = por %p92, %p93
      %s95 = ssub.s32 %s14, %s21
      %p96 = scmp.eq.s32.totalorder %s95, 0
      %s98 = sadd.s32 %s97, 1
      %s99 = scalar_select %p96, %s97, %s98
      %p102 = pneg %p96
      %p103 = scmp.eq.s32.totalorder %s14, 1
      %p104 = por %p102, %p103
      %p105 = scmp.ne.s32.totalorder %s97, %s100
      %p106 = scmp.eq.s32.totalorder %s14, 0
      %p107 = por %p105, %p106
      %p108 = scmp.ne.s32.totalorder %s97, %s100
      %p109 = scmp.eq.s32.totalorder %s19, 1
      %p110 = por %p108, %p109
      %p111 = scmp.ne.s32.totalorder %s100, %s101
      %p112 = scmp.eq.s32.totalorder %s19, 0
      %p113 = por %p111, %p112
      %p114 = scmp.ne.s32.totalorder %s100, %s101
      %p115 = scmp.eq.s32.totalorder %s20, 1
      %p116 = por %p114, %p115
      %p118 = scmp.ne.s32.totalorder %s101, %s117
      %p119 = scmp.eq.s32.totalorder %s20, 0
      %p120 = por %p118, %p119
      %p121 = scmp.le.s32.totalorder 1, %s14
      %p122 = scmp.lt.s32.totalorder %s14, 3
      %p123 = pnand %p121, %p122
      %p124 = pneg %p123
      // Predicated region
      $region9: #{tpu_custom_call.1} parent=5 // pred_check
        _
      $region10: #{tpu_custom_call.1} parent=5 // pred_check_branch
        %126 = sbr.rel (%p123) target = $region12
      $region11: #{tpu_custom_call.1} parent=5 // pred_region
        %s127 = ssub.s32 %s14, 1
        // Predicated region
        $region13: #{tpu_custom_call.1} parent=11 // pred_check
          %p128 = pneg %p35
        $region14: #{tpu_custom_call.1} parent=11 // pred_check_branch
          %130 = sbr.rel (%p128) target = $region16
        $region15: #{tpu_custom_call.1} parent=11 // pred_region
          %s132 = ssub.s32 16, 16
          %133 = vsyncadd [#allocation4], %s132
          %s135 = sshll.u32 %s0, 4
          %s136 = int_to_ptr.vmem [resolvable:$true] %s135
          %138 = dma.vmem_to_smem %s136, 16, [#allocation2], [#allocation4]
        $region16: #{tpu_custom_call.1} parent=11 // pred_fallthru
          _
      $region12: #{tpu_custom_call.1} parent=5 // pred_fallthru
        _
      %p139 = scmp.lt.s32.totalorder %s14, 2
      // Predicated region
      $region17: #{tpu_custom_call.1} parent=5 // pred_check
        %p140 = pneg %p139
      $region18: #{tpu_custom_call.1} parent=5 // pred_check_branch
        %142 = sbr.rel (%p140) target = $region20
      $region19: #{tpu_custom_call.1} parent=5 // pred_region
        // Predicated region
        $region21: #{tpu_custom_call.1} parent=19 // pred_check
          %p143 = pneg %p55
        $region22: #{tpu_custom_call.1} parent=19 // pred_check_branch
          %145 = sbr.rel (%p143) target = $region24
        $region23: #{tpu_custom_call.1} parent=19 // pred_region
          %s146 = smul.u32 4, %s14
          %p147 = scmp.lt.s32.totalorder %s146, 7
          %s148 = scalar_select %p147, %s146, 7
          %s149 = smul.addr %s148, 8
          %s150 = scalar_lea.vmem %s1, %s149
          %s151 = smul.u32 4, %s14
        $region24: #{tpu_custom_call.1} parent=19 // pred_fallthru
          _
      $region20: #{tpu_custom_call.1} parent=5 // pred_fallthru
        _
      %p152 = scmp.le.s32.totalorder 1, %s14
      %p153 = scmp.lt.s32.totalorder %s14, 3
      %p154 = pnand %p152, %p153
      %p155 = pneg %p154
      // Predicated region
      $region25: #{tpu_custom_call.1} parent=5 // pred_check
        _
      $region26: #{tpu_custom_call.1} parent=5 // pred_check_branch
        %157 = sbr.rel (%p154) target = $region28
      $region27: #{tpu_custom_call.1} parent=5 // pred_region
        %s158 = ssub.s32 %s14, 1
        // Predicated region
        $region29: #{tpu_custom_call.1} parent=27 // pred_check
          %p159 = pneg %p35
        $region30: #{tpu_custom_call.1} parent=27 // pred_check_branch
          %161 = sbr.rel (%p159) target = $region32
        $region31: #{tpu_custom_call.1} parent=27 // pred_region
          %162 = dma.done [#allocation4], 16
        $region32: #{tpu_custom_call.1} parent=27 // pred_fallthru
          _
        %163 = sfence
        %p164 = pneg %p35
        %p165 = pneg %p32
        %s166 = smul.u32 4, %s19
        %p167 = scmp.lt.s32.totalorder %s166, 7
        %s168 = scalar_select %p167, %s166, 7
        %s169 = smul.addr %s168, 8
        %s170 = scalar_lea.vmem %s1, %s169
        %p171 = pneg %p61
        %p172 = pneg %p58
        %p173 = pneg %p87
        %p174 = pneg %p84
        %s175 = smul.u32 4, %s19
        %p176 = scmp.lt.s32.totalorder %s175, 7
        %s177 = scalar_select %p176, %s175, 7
        %s178 = smul.addr %s177, 8
        %s179 = scalar_lea.vmem %s2, %s178
        %p180 = pneg %p113
        %p181 = pneg %p110
        %s182 = sand.u32 %s100, 1
        %s183 = scalar_lea.sflag [#allocation3], %s182
        %s184 = sand.u32 %s100, 1
        %s185 = smul.addr %s184, 32
        %s186 = scalar_lea.vmem [#allocation5], %s185
        %s187 = smul.u32 4, %s19
        %p188 = scmp.lt.s32.totalorder %s187, 7
        %s189 = scalar_select %p188, %s187, 7
        %s190 = smul.addr %s189, 8
        %s191 = scalar_lea.vmem %s1, %s190
        %s192 = smul.u32 4, %s19
        %s193 = smul.u32 4, %s19
        %p194 = scmp.lt.s32.totalorder %s193, 7
        %s195 = scalar_select %p194, %s193, 7
        %s196 = smul.addr %s195, 8
        %s197 = scalar_lea.vmem %s2, %s196
        %s198 = smul.u32 4, %s19
        %s199 = smul.u32 4, %s19
        %v200 = vld [vmem:[%s191] sm:$0xff]
        %v201 = vld [vmem:[%s191 + $0x8] sm:$0xff]
        %v202 = vld [vmem:[%s191 + $0x10] sm:$0xff]
        %v203 = vld [vmem:[%s191 + $0x18] sm:$0xff]
        %s204 = sld [smem:[#allocation2]]
        %s205 = sld [smem:[#allocation2 + $0x1]]
        %s206 = sld [smem:[#allocation2 + $0x2]]
        %s207 = sld [smem:[#allocation2 + $0x3]]
        %vm208 = vcmask 261120
        %v209 = vsel %vm208, %v200, -inf
        %210 = vmax.xlane.f32.xlu0 %v209
        %v211 = vpop.xlane.xlu0 %210
        %v212 = vsel %vm208, %v201, -inf
        %213 = vmax.xlane.f32.xlu0 %v212
        %v214 = vpop.xlane.xlu0 %213
        %v215 = vsel %vm208, %v202, -inf
        %216 = vmax.xlane.f32.xlu0 %v215
        %v217 = vpop.xlane.xlu0 %216
        %v218 = vsel %vm208, %v203, -inf
        %219 = vmax.xlane.f32.xlu0 %v218
        %v220 = vpop.xlane.xlu0 %219
        %v221 = vstv %s204
        %v222 = vmax.f32 %v211, %v221
        %v223 = vmax.f32 %v214, %v221
        %v224 = vmax.f32 %v217, %v221
        %v225 = vmax.f32 %v220, %v221
        %v226 = vsub.f32 %v200, %v222
        %v227 = vsub.f32 %v201, %v223
        %v228 = vsub.f32 %v202, %v224
        %v229 = vsub.f32 %v203, %v225
        %v230 = vmul.f32 %v226, 1.442695
        %v231 = vpow.pop %v230
        %v232 = vmul.f32 %v227, 1.442695
        %v233 = vpow.pop %v232
        %v234 = vmul.f32 %v228, 1.442695
        %v235 = vpow.pop %v234
        %v236 = vmul.f32 %v229, 1.442695
        %v237 = vpow.pop %v236
        %v238 = vsel %vm208, %v231, 0.0
        %239 = vadd.xlane.f32.xlu0 %v238
        %v240 = vpop.xlane.xlu0 %239
        %v241 = vsel %vm208, %v233, 0.0
        %242 = vadd.xlane.f32.xlu0 %v241
        %v243 = vpop.xlane.xlu0 %242
        %v244 = vsel %vm208, %v235, 0.0
        %245 = vadd.xlane.f32.xlu0 %v244
        %v246 = vpop.xlane.xlu0 %245
        %v247 = vsel %vm208, %v237, 0.0
        %248 = vadd.xlane.f32.xlu0 %v247
        %v249 = vpop.xlane.xlu0 %248
        %v250 = vsub.f32 %v221, %v222
        %v251 = vsub.f32 %v221, %v223
        %v252 = vsub.f32 %v221, %v224
        %v253 = vsub.f32 %v221, %v225
        %v254 = vmul.f32 %v250, 1.442695
        %v255 = vpow.pop %v254
        %v256 = vmul.f32 %v251, 1.442695
        %v257 = vpow.pop %v256
        %v258 = vmul.f32 %v252, 1.442695
        %v259 = vpow.pop %v258
        %v260 = vmul.f32 %v253, 1.442695
        %v261 = vpow.pop %v260
        %v262 = vadd.f32 %v240, %v255
        %v263 = vadd.f32 %v243, %v257
        %v264 = vadd.f32 %v246, %v259
        %v265 = vadd.f32 %v249, %v261
        %v266 = vrcp.pop %v262
        %v267 = vmul.f32 %v231, %v266
        %v268 = vrcp.pop %v263
        %v269 = vmul.f32 %v233, %v268
        %v270 = vrcp.pop %v264
        %v271 = vmul.f32 %v235, %v270
        %v272 = vrcp.pop %v265
        %v273 = vmul.f32 %v237, %v272
        %274 = vst.msk [vmem:[%s197] sm:$0xff] %vm208, %v267
        %275 = vst.msk [vmem:[%s197 + $0x8] sm:$0xff] %vm208, %v269
        %276 = vst.msk [vmem:[%s197 + $0x10] sm:$0xff] %vm208, %v271
        %277 = vst.msk [vmem:[%s197 + $0x18] sm:$0xff] %vm208, %v273
        %v278 = vlaneseq
        %v279 = vand.u32 %v278, 127
        %v280 = vsel %vm208, %v267, -inf
        %281 = vmax.xlane.f32.xlu0 %v280
        %v282 = vpop.xlane.xlu0 %281
        %v283 = vsel %vm208, %v269, -inf
        %284 = vmax.xlane.f32.xlu0 %v283
        %v285 = vpop.xlane.xlu0 %284
        %v286 = vsel %vm208, %v271, -inf
        %287 = vmax.xlane.f32.xlu0 %v286
        %v288 = vpop.xlane.xlu0 %287
        %v289 = vsel %vm208, %v273, -inf
        %290 = vmax.xlane.f32.xlu0 %v289
        %v291 = vpop.xlane.xlu0 %290
        %vm292 = vcmp.eq.f32.partialorder %v267, %v282
        %vm293 = vcmp.eq.f32.partialorder %v269, %v285
        %vm294 = vcmp.eq.f32.partialorder %v271, %v288
        %vm295 = vcmp.eq.f32.partialorder %v273, %v291
        %v296 = vsel %vm292, %v279, 32
        %v297 = vsel %vm293, %v279, 32
        %v298 = vsel %vm294, %v279, 32
        %v299 = vsel %vm295, %v279, 32
        %v300 = vsel %vm208, %v296, 2147483647
        %v301 = vand.u32 %v300, 65535
        %v302 = vshra.s32 %v300, 16
        %v303 = vcvt.s32.f32 %v301
        %v304 = vcvt.s32.f32 %v302
        %305 = vmin.xlane.f32.xlu0 %v304
        %v306 = vpop.xlane.xlu0 %305
        %vm307 = vcmp.eq.f32.partialorder %v304, %v306
        %v308 = vsel %vm307, %v303, inf
        %309 = vmin.xlane.f32.xlu0 %v308
        %v310 = vpop.xlane.xlu0 %309
        %v311 = vcvt.f32.s32 %v310
        %v312 = vcvt.f32.s32 %v306
        %v313 = vshll.u32 %v312, 16
        %v314 = vadd.s32 %v313, %v311
        %v315 = vsel %vm208, %v297, 2147483647
        %v316 = vand.u32 %v315, 65535
        %v317 = vshra.s32 %v315, 16
        %v318 = vcvt.s32.f32 %v316
        %v319 = vcvt.s32.f32 %v317
        %320 = vmin.xlane.f32.xlu0 %v319
        %v321 = vpop.xlane.xlu0 %320
        %vm322 = vcmp.eq.f32.partialorder %v319, %v321
        %v323 = vsel %vm322, %v318, inf
        %324 = vmin.xlane.f32.xlu0 %v323
        %v325 = vpop.xlane.xlu0 %324
        %v326 = vcvt.f32.s32 %v325
        %v327 = vcvt.f32.s32 %v321
        %v328 = vshll.u32 %v327, 16
        %v329 = vadd.s32 %v328, %v326
        %v330 = vsel %vm208, %v298, 2147483647
        %v331 = vand.u32 %v330, 65535
        %v332 = vshra.s32 %v330, 16
        %v333 = vcvt.s32.f32 %v331
        %v334 = vcvt.s32.f32 %v332
        %335 = vmin.xlane.f32.xlu0 %v334
        %v336 = vpop.xlane.xlu0 %335
        %vm337 = vcmp.eq.f32.partialorder %v334, %v336
        %v338 = vsel %vm337, %v333, inf
        %339 = vmin.xlane.f32.xlu0 %v338
        %v340 = vpop.xlane.xlu0 %339
        %v341 = vcvt.f32.s32 %v340
        %v342 = vcvt.f32.s32 %v336
        %v343 = vshll.u32 %v342, 16
        %v344 = vadd.s32 %v343, %v341
        %v345 = vsel %vm208, %v299, 2147483647
        %v346 = vand.u32 %v345, 65535
        %v347 = vshra.s32 %v345, 16
        %v348 = vcvt.s32.f32 %v346
        %v349 = vcvt.s32.f32 %v347
        %350 = vmin.xlane.f32.xlu0 %v349
        %v351 = vpop.xlane.xlu0 %350
        %vm352 = vcmp.eq.f32.partialorder %v349, %v351
        %v353 = vsel %vm352, %v348, inf
        %354 = vmin.xlane.f32.xlu0 %v353
        %v355 = vpop.xlane.xlu0 %354
        %v356 = vcvt.f32.s32 %v355
        %v357 = vcvt.f32.s32 %v351
        %v358 = vshll.u32 %v357, 16
        %v359 = vadd.s32 %v358, %v356
        %v360 = vsub.s32 %v279, %v314
        %v361 = vsub.s32 %v279, %v329
        %v362 = vsub.s32 %v279, %v344
        %v363 = vsub.s32 %v279, %v359
        %vm364 = vcmp.lt.s32.totalorder %v360, 0
        %v365 = vsub.s32 0, %v360
        %v366 = vsel %vm364, %v365, %v360
        %vm367 = vcmp.lt.s32.totalorder %v361, 0
        %v368 = vsub.s32 0, %v361
        %v369 = vsel %vm367, %v368, %v361
        %vm370 = vcmp.lt.s32.totalorder %v362, 0
        %v371 = vsub.s32 0, %v362
        %v372 = vsel %vm370, %v371, %v362
        %vm373 = vcmp.lt.s32.totalorder %v363, 0
        %v374 = vsub.s32 0, %v363
        %v375 = vsel %vm373, %v374, %v363
        %vm376 = vcmp.le.s32.totalorder %v366, 1
        %vm377 = vcmp.le.s32.totalorder %v369, 1
        %vm378 = vcmp.le.s32.totalorder %v372, 1
        %vm379 = vcmp.le.s32.totalorder %v375, 1
        %v380 = vsel %vm376, %v267, 0.0
        %v381 = vsel %vm377, %v269, 0.0
        %v382 = vsel %vm378, %v271, 0.0
        %v383 = vsel %vm379, %v273, 0.0
        %v384 = vsel %vm208, %v380, 0.0
        %385 = vadd.xlane.f32.xlu0 %v384
        %v386 = vpop.xlane.xlu0 %385
        %v387 = vsel %vm208, %v381, 0.0
        %388 = vadd.xlane.f32.xlu0 %v387
        %v389 = vpop.xlane.xlu0 %388
        %v390 = vsel %vm208, %v382, 0.0
        %391 = vadd.xlane.f32.xlu0 %v390
        %v392 = vpop.xlane.xlu0 %391
        %v393 = vsel %vm208, %v383, 0.0
        %394 = vadd.xlane.f32.xlu0 %v393
        %v395 = vpop.xlane.xlu0 %394
        %vm396 = vcmp.lt.f32.partialorder %v386, 0.1
        %vm397 = vcmp.lt.f32.partialorder %v389, 0.1
        %vm398 = vcmp.lt.f32.partialorder %v392, 0.1
        %vm399 = vcmp.lt.f32.partialorder %v395, 0.1
        %v400 = vsel %vm396, 1.0, %v386
        %v401 = vsel %vm397, 1.0, %v389
        %v402 = vsel %vm398, 1.0, %v392
        %v403 = vsel %vm399, 1.0, %v395
        %v404 = vcvt.s32.f32 %v279
        %v405 = vmul.f32 %v380, %v404
        %v406 = vmul.f32 %v381, %v404
        %v407 = vmul.f32 %v382, %v404
        %v408 = vmul.f32 %v383, %v404
        %v409 = vsel %vm208, %v405, 0.0
        %410 = vadd.xlane.f32.xlu0 %v409
        %v411 = vpop.xlane.xlu0 %410
        %v412 = vsel %vm208, %v406, 0.0
        %413 = vadd.xlane.f32.xlu0 %v412
        %v414 = vpop.xlane.xlu0 %413
        %v415 = vsel %vm208, %v407, 0.0
        %416 = vadd.xlane.f32.xlu0 %v415
        %v417 = vpop.xlane.xlu0 %416
        %v418 = vsel %vm208, %v408, 0.0
        %419 = vadd.xlane.f32.xlu0 %v418
        %v420 = vpop.xlane.xlu0 %419
        %v421 = vrcp.pop %v400
        %v422 = vmul.f32 %v411, %v421
        %v423 = vrcp.pop %v401
        %v424 = vmul.f32 %v414, %v423
        %v425 = vrcp.pop %v402
        %v426 = vmul.f32 %v417, %v425
        %v427 = vrcp.pop %v403
        %v428 = vmul.f32 %v420, %v427
        %v429 = vstv %s207
        %v430 = vmul.f32 %v422, %v429
        %v431 = vmul.f32 %v424, %v429
        %v432 = vmul.f32 %v426, %v429
        %v433 = vmul.f32 %v428, %v429
        %v434 = vstv %s206
        %v435 = vmul.f32 %v434, %v430
        %v436 = vmul.f32 %v434, %v431
        %v437 = vmul.f32 %v434, %v432
        %v438 = vmul.f32 %v434, %v433
        %v439 = vstv %s205
        %v440 = vadd.f32 %v439, %v435
        %v441 = vadd.f32 %v439, %v436
        %v442 = vadd.f32 %v439, %v437
        %v443 = vadd.f32 %v439, %v438
        %v444 = vmul.f32 %v440, 1.442695
        %v445 = vpow.pop %v444
        %v446 = vmul.f32 %v441, 1.442695
        %v447 = vpow.pop %v446
        %v448 = vmul.f32 %v442, 1.442695
        %v449 = vpow.pop %v448
        %v450 = vmul.f32 %v443, 1.442695
        %v451 = vpow.pop %v450
        %vm452 = vcmp.eq.s32.totalorder %v279, 0
        %v453 = vsel %vm452, %v422, 0.0
        %v454 = vsel %vm452, %v424, 0.0
        %v455 = vsel %vm452, %v426, 0.0
        %v456 = vsel %vm452, %v428, 0.0
        %vm457 = vcmp.eq.s32.totalorder %v279, 1
        %v458 = vsel %vm457, %v445, %v453
        %v459 = vsel %vm457, %v447, %v454
        %v460 = vsel %vm457, %v449, %v455
        %v461 = vsel %vm457, %v451, %v456
        %vm462 = vcmp.eq.s32.totalorder %v279, 2
        %v463 = vcvt.s32.f32 %v314
        %v464 = vcvt.s32.f32 %v329
        %v465 = vcvt.s32.f32 %v344
        %v466 = vcvt.s32.f32 %v359
        %v467 = vsel %vm462, %v463, %v458
        %v468 = vsel %vm462, %v464, %v459
        %v469 = vsel %vm462, %v465, %v460
        %v470 = vsel %vm462, %v466, %v461
        %471 = vst [vmem:[%s186] sm:$0xff] %v467
        %472 = vst [vmem:[%s186 + $0x8] sm:$0xff] %v468
        %473 = vst [vmem:[%s186 + $0x10] sm:$0xff] %v469
        %474 = vst [vmem:[%s186 + $0x18] sm:$0xff] %v470
        %s475 = smul.u32 4, %s19
        %p476 = scmp.lt.s32.totalorder %s475, 7
        %s477 = scalar_select %p476, %s475, 7
        %s478 = smul.addr %s477, 8
        %s479 = scalar_lea.vmem %s2, %s478
        %s480 = sand.u32 %s100, 1
        %s481 = scalar_lea.sflag [#allocation3], %s480
        %s482 = sand.u32 %s100, 1
        %s483 = smul.addr %s482, 32
        %s484 = scalar_lea.vmem [#allocation5], %s483
        // Predicated region
        $region33: #{tpu_custom_call.1} parent=27 // pred_check
          %p485 = pneg %p84
        $region34: #{tpu_custom_call.1} parent=27 // pred_check_branch
          %487 = sbr.rel (%p485) target = $region36
        $region35: #{tpu_custom_call.1} parent=27 // pred_region
          %s488 = smul.u32 4, %s19
        $region36: #{tpu_custom_call.1} parent=27 // pred_fallthru
          _
        // Predicated region
        $region37: #{tpu_custom_call.1} parent=27 // pred_check
          %p489 = pneg %p110
        $region38: #{tpu_custom_call.1} parent=27 // pred_check_branch
          %491 = sbr.rel (%p489) target = $region40
        $region39: #{tpu_custom_call.1} parent=27 // pred_region
          %s492 = smul.u32 4, %s19
          %s494 = ssub.s32 512, 512
          %495 = vsyncadd %s481, %s494
          %s496 = smul.addr %s492, 128
          %s497 = scalar_lea.hbm %s3, %s496
          %s498 = sshll.u32 %s484, 4
          %s499 = int_to_ptr.vmem [resolvable:$true] %s498
          %504 = dma.vmem_to_hbm [thread:$0]  %s499, 512, %s497, %s481, 128, 128, 8
        $region40: #{tpu_custom_call.1} parent=27 // pred_fallthru
          _
      $region28: #{tpu_custom_call.1} parent=5 // pred_fallthru
        _
      %p505 = scmp.le.s32.totalorder 2, %s14
      // Predicated region
      $region41: #{tpu_custom_call.1} parent=5 // pred_check
        %p506 = pneg %p505
      $region42: #{tpu_custom_call.1} parent=5 // pred_check_branch
        %508 = sbr.rel (%p506) target = $region44
      $region43: #{tpu_custom_call.1} parent=5 // pred_region
        %s509 = ssub.s32 %s14, 2
        // Predicated region
        $region45: #{tpu_custom_call.1} parent=43 // pred_check
          %p510 = pneg %p90
        $region46: #{tpu_custom_call.1} parent=43 // pred_check_branch
          %512 = sbr.rel (%p510) target = $region48
        $region47: #{tpu_custom_call.1} parent=43 // pred_region
          %s513 = smul.u32 4, %s20
          %p514 = scmp.lt.s32.totalorder %s513, 7
          %s515 = scalar_select %p514, %s513, 7
          %s516 = smul.addr %s515, 8
          %s517 = scalar_lea.vmem %s2, %s516
        $region48: #{tpu_custom_call.1} parent=43 // pred_fallthru
          _
        // Predicated region
        $region49: #{tpu_custom_call.1} parent=43 // pred_check
          %p518 = pneg %p116
        $region50: #{tpu_custom_call.1} parent=43 // pred_check_branch
          %520 = sbr.rel (%p518) target = $region52
        $region51: #{tpu_custom_call.1} parent=43 // pred_region
          %s521 = sand.u32 %s101, 1
          %s522 = scalar_lea.sflag [#allocation3], %s521
          %s523 = sand.u32 %s101, 1
          %s524 = smul.addr %s523, 32
          %s525 = scalar_lea.vmem [#allocation5], %s524
          %526 = dma.done %s522, 512
        $region52: #{tpu_custom_call.1} parent=43 // pred_fallthru
          _
      $region44: #{tpu_custom_call.1} parent=5 // pred_fallthru
        _
    $region6: #{tpu_custom_call.1} parent=1 // loop_footer
      %s18 = sadd.s32 1, %s14
    $region7: #{tpu_custom_call.1} parent=1 // loop_footer_branch
      %13 = sbr.rel target = $region3
    $region8: #{tpu_custom_call.1} parent=1 // loop_exit
      _
    %527 = vsyncpa [#allocation3], 1
    %s528 = scalar_lea.sflag [#allocation3], 1
    %529 = vsyncpa %s528, 1
    %530 = vsyncpa [#allocation4], 1
    %s531 = scalar_lea.sflag [#allocation4], 1
    %532 = vsyncpa %s531, 1

</llo_original>
